<compile_context>
chip_gen: v6e
topology: v6e:2x2x1
jax: 0.10.0
libtpu: 0.0.40
codegen_flags: <defaults>
</compile_context>

<pallas_src>
import jax
import jax.numpy as jnp
from jax.experimental import pallas as pl
from jax.experimental.pallas import tpu as pltpu

IN_FEATURES = 10
OUT_FEATURES = 5
GROUP = 64                      # 64*10 = 640 lanes (multiple of 128) -> lane-dense blocks
IN_W = GROUP * IN_FEATURES      # 640
OUT_W = GROUP * OUT_FEATURES    # 320


def _round_up(x, m):
    return ((x + m - 1) // m) * m


def linear_kernel(x_ref, w_ref, b_ref, o_ref):
    # x_ref: (tbr, 640)  -- 64 batch rows packed per sublane-row
    # w_ref: (640, 320)  -- block-diagonal expanded weight (64 copies of W^T), resident
    # b_ref: (1, 320)    -- tiled bias, resident
    # o_ref: (tbr, 320)  -- 64 output rows per sublane-row, lane-dense store
    y = jnp.dot(x_ref[...], w_ref[...], preferred_element_type=jnp.float32)
    o_ref[...] = (y + b_ref[...]).astype(o_ref.dtype)


def testnet_forward(x, weight, bias):
    """x: (B, 10) f32, weight: (5, 10) f32, bias: (5,) f32 -> (B, 5) f32."""
    B = x.shape[0]
    # TODO(synk): for small batches (B up to a few thousand) prefer a plain fused XLA
    # dot over a standalone pallas_call (launch/step overhead dominates there).

    # Pad only to the next multiple of GROUP (<= 63 rows; no-op when aligned; also
    # handles B == 0 safely). Reshape to the packed layout is a free row-major view.
    B_pad = _round_up(max(B, 1), GROUP)
    if B_pad != B:
        x = jnp.pad(x, ((0, B_pad - B), (0, 0)))
    G = B_pad // GROUP
    xr = x.reshape(G, IN_W)                                   # (G, 640), no relayout

    # Expanded parameters (tiny, built once per call):
    #   W_exp[g*10+f, g*5+o] = W[o, f]  -> block-diagonal kron(I_64, W^T)
    w_exp = jnp.kron(jnp.eye(GROUP, dtype=weight.dtype), weight.T)   # (640, 320)
    b_exp = jnp.tile(bias, GROUP).reshape(1, OUT_W)                  # (1, 320)

    # Tile the row-group axis.
    #   MAX_TBR = 2048 row-groups = 131072 batch rows per step:
    #     VMEM (double-buffered): x 2*2048*640*4 ~ 10.5 MiB, y 2*2048*384*4 ~ 6.3 MiB,
    #     W_exp ~2 MiB  => ~19 MiB  (< 32 MiB limit; safe on v7x's 64 MiB VMEM).
    #   Per-step HBM ~7.9 MB, so the ~0.35 us/step grid overhead is <12% everywhere.
    #   For large batches force >= 2 steps so v7x's 2 TensorCores split the work;
    #   never split below 512 groups (32768 rows) per step.
    MAX_TBR = 2048
    MIN_SPLIT_TBR = 512
    if G <= 2 * MIN_SPLIT_TBR:
        tbr = G                                               # single step, small batch
    else:
        tbr = min(MAX_TBR, _round_up(pl.cdiv(G, 2), 8))       # >= 2 steps, sublane-aligned
    grid = (pl.cdiv(G, tbr),)

    itemsize = jnp.dtype(x.dtype).itemsize
    cost = pl.CostEstimate(
        flops=2 * G * IN_W * OUT_W,
        transcendentals=0,
        bytes_accessed=(xr.size + w_exp.size + b_exp.size + G * OUT_W) * itemsize,
    )

    out = pl.pallas_call(
        linear_kernel,
        out_shape=jax.ShapeDtypeStruct((G, OUT_W), x.dtype),
        grid_spec=pltpu.PrefetchScalarGridSpec(
            num_scalar_prefetch=0,
            grid=grid,
            in_specs=[
                # Packed activations: tbr row-groups per step, full 640-lane width.
                pl.BlockSpec((tbr, IN_W), lambda i: (i, 0)),
                # Expanded weight: whole (640, 320), resident across all steps.
                pl.BlockSpec((IN_W, OUT_W), lambda i: (0, 0)),
                # Tiled bias row (1, 320), resident.
                pl.BlockSpec((1, OUT_W), lambda i: (0, 0)),
            ],
            out_specs=pl.BlockSpec((tbr, OUT_W), lambda i: (i, 0)),
        ),
        compiler_params=pltpu.CompilerParams(
            dimension_semantics=("parallel",),
            vmem_limit_bytes=32 << 20,   # explicit: v5e scoped default is only 16 MiB
        ),
        cost_estimate=cost,
    )(xr, w_exp, b_exp)

    # Free row-major regrouping back to the nn.Linear (B, 5) layout; drop padding.
    y = out.reshape(B_pad, OUT_FEATURES)
    return y[:B] if B_pad != B else y


if __name__ == "__main__":
    key = jax.random.PRNGKey(0)
    kx, kw, kb = jax.random.split(key, 3)

    B = 8  # tiny test batch; exercises the padding + slice-back path
    x = jax.random.normal(kx, (B, IN_FEATURES), dtype=jnp.float32)
    # Deterministic parameter init (synthetic, not a checkpoint load).
    weight = jax.random.normal(kw, (OUT_FEATURES, IN_FEATURES), dtype=jnp.float32) * 0.1
    bias = jax.random.normal(kb, (OUT_FEATURES,), dtype=jnp.float32) * 0.1

    out = testnet_forward(x, weight, bias)
    out = jax.block_until_ready(out)

    # Reference check against plain JAX.
    ref = x @ weight.T + bias
    assert out.shape == (B, OUT_FEATURES)
    assert jnp.allclose(out, ref, atol=1e-5, rtol=1e-5)
    print("KERNEL_OK")
</pallas_src>

<mosaic_0001>
module attributes {stable_mosaic.version = 11 : i64} {
  func.func @linear_kernel(%arg0: i32, %arg1: memref<1x640xf32, #tpu.memory_space<vmem>>, %arg2: memref<640x320xf32, #tpu.memory_space<vmem>>, %arg3: memref<1x320xf32, #tpu.memory_space<vmem>>, %arg4: memref<1x320xf32, #tpu.memory_space<vmem>>) attributes {dimension_semantics = [#tpu.dimension_semantics<parallel>], iteration_bounds = array<i64: 1>, scalar_prefetch = 0 : i64, scratch_operands = 0 : i64, tpu.core_type = #tpu.core_type<tc>, window_params = [{transform_indices = @transform_0, window_bounds = array<i64: 1, 640>}, {pipeline_mode = #tpu.pipeline_mode<synchronous>, transform_indices = @transform_1, window_bounds = array<i64: 640, 320>}, {pipeline_mode = #tpu.pipeline_mode<synchronous>, transform_indices = @transform_2, window_bounds = array<i64: 1, 320>}, {transform_indices = @transform_3, window_bounds = array<i64: 1, 320>}]} {
    %c0 = arith.constant 0 : index
    %c0_0 = arith.constant 0 : index
    %0 = vector.load %arg1[%c0, %c0_0] : memref<1x640xf32, #tpu.memory_space<vmem>>, vector<1x640xf32>
    %c0_1 = arith.constant 0 : index
    %c0_2 = arith.constant 0 : index
    %1 = vector.load %arg2[%c0_1, %c0_2] : memref<640x320xf32, #tpu.memory_space<vmem>>, vector<640x320xf32>
    %cst = arith.constant dense<0.000000e+00> : vector<1x320xf32>
    %2 = tpu.matmul %0, %1, %cst {dimension_numbers = #tpu.dot_dimension_numbers<[1], [0], [0], [1], [0, 0, 1, 1], [], []>} : vector<1x640xf32>, vector<640x320xf32>, vector<1x320xf32> -> vector<1x320xf32>
    %c0_3 = arith.constant 0 : index
    %c0_4 = arith.constant 0 : index
    %3 = vector.load %arg3[%c0_3, %c0_4] : memref<1x320xf32, #tpu.memory_space<vmem>>, vector<1x320xf32>
    %4 = arith.addf %2, %3 : vector<1x320xf32>
    %c0_5 = arith.constant 0 : index
    %c0_6 = arith.constant 0 : index
    %5 = vector.load %arg4[%c0_5, %c0_6] : memref<1x320xf32, #tpu.memory_space<vmem>>, vector<1x320xf32>
    tpu.vector_store %arg4[%c0_5, %c0_6], %4 {strides = array<i32>} : memref<1x320xf32, #tpu.memory_space<vmem>>, vector<1x320xf32>,
    return
  }
  func.func @transform_0(%arg0: i32) -> (i32, i32) {
    %c0_i32 = arith.constant 0 : i32
    %c0_i32_0 = arith.constant 0 : i32
    return %arg0, %c0_i32 : i32, i32
  }
  func.func @transform_1(%arg0: i32) -> (i32, i32) {
    %c0_i32 = arith.constant 0 : i32
    %c0_i32_0 = arith.constant 0 : i32
    %c0_i32_1 = arith.constant 0 : i32
    return %c0_i32, %c0_i32_0 : i32, i32
  }
  func.func @transform_2(%arg0: i32) -> (i32, i32) {
    %c0_i32 = arith.constant 0 : i32
    %c0_i32_0 = arith.constant 0 : i32
    %c0_i32_1 = arith.constant 0 : i32
    return %c0_i32, %c0_i32_0 : i32, i32
  }
  func.func @transform_3(%arg0: i32) -> (i32, i32) {
    %c0_i32 = arith.constant 0 : i32
    %c0_i32_0 = arith.constant 0 : i32
    return %arg0, %c0_i32 : i32, i32
  }
}

</mosaic_0001>

<llo_original>
// kernel: tpu_custom_call.1
$region0: #{tpu_custom_call.1}
  #allocation0 [shape = 'u32[]', space=smem, size = 0x4, offset = 0x4, fixed_abs, tag = 'smem constant byte address 0x4 - core index']
  #allocation1 [shape = 'u32[144,128]{1,0:T(1,128)}', space=vmem, size = 0x12000, scoped, tag = 'internal scratch']
  %s0 = inlined_call_operand.vmem [shape: f32[1,640], index: 0, kind: input, shape index: {}]
  %s1 = inlined_call_operand.vmem [shape: f32[640,320], index: 1, kind: input, shape index: {}]
  %s2 = inlined_call_operand.vmem [shape: f32[1,320], index: 2, kind: input, shape index: {}]
  %s3 = inlined_call_operand.hbm [shape: f32[1,320], index: 3, kind: output, shape index: {}]
  %s4 = sld [smem:[#allocation0]]
  $region22: #{tpu_custom_call.1} parent=0
    _
  %s6 = ssub.s32 1, %s4
  %s7 = scalar_select 0, %s6, %s4
  $region1: #{tpu_custom_call.1} parent=0
    #allocation2 [shape = 'u8[1536]{0}', space=vmem, size = 0x800, scoped, tag = 'output window, operand 0, single buffered']
    #allocation3 [shape = 's32[1]{0}', space=sflag, size = 0x4, scoped, tag = 'scoped memory for tpu_custom_call.1']
    %8 = vsyncpa [#allocation3], 0
    // Predicated region
    $region2: #{tpu_custom_call.1} parent=1 // pred_check
      _
    $region3: #{tpu_custom_call.1} parent=1 // pred_check_branch
      %10 = sbr.rel (0) target = $region5
    $region4: #{tpu_custom_call.1} parent=1 // pred_region
      _
    $region5: #{tpu_custom_call.1} parent=1 // pred_fallthru
      _
    // Predicated region
    $region6: #{tpu_custom_call.1} parent=1 // pred_check
      _
    $region7: #{tpu_custom_call.1} parent=1 // pred_check_branch
      %12 = sbr.rel (0) target = $region9
    $region8: #{tpu_custom_call.1} parent=1 // pred_region
      _
    $region9: #{tpu_custom_call.1} parent=1 // pred_fallthru
      _
    // Predicated region
    $region10: #{tpu_custom_call.1} parent=1 // pred_check
      _
    $region11: #{tpu_custom_call.1} parent=1 // pred_check_branch
      %14 = sbr.rel (0) target = $region13
    $region12: #{tpu_custom_call.1} parent=1 // pred_region
      _
    $region13: #{tpu_custom_call.1} parent=1 // pred_fallthru
      _
    %v15 = vld [vmem:[%s0] sm:$0x1f]
    %v16 = vld [vmem:[%s1] sm:$0xff]
    %v17 = vld [vmem:[%s1 + $0x8] sm:$0xff]
    %v18 = vld [vmem:[%s1 + $0x10] sm:$0xff]
    %v19 = vld [vmem:[%s1 + $0x18] sm:$0xff]
    %v20 = vld [vmem:[%s1 + $0x20] sm:$0xff]
    %v21 = vld [vmem:[%s1 + $0x28] sm:$0xff]
    %v22 = vld [vmem:[%s1 + $0x30] sm:$0xff]
    %v23 = vld [vmem:[%s1 + $0x38] sm:$0xff]
    %v24 = vld [vmem:[%s1 + $0x40] sm:$0xff]
    %v25 = vld [vmem:[%s1 + $0x48] sm:$0xff]
    %v26 = vld [vmem:[%s1 + $0x50] sm:$0xff]
    %v27 = vld [vmem:[%s1 + $0x58] sm:$0xff]
    %v28 = vld [vmem:[%s1 + $0x60] sm:$0xff]
    %v29 = vld [vmem:[%s1 + $0x68] sm:$0xff]
    %v30 = vld [vmem:[%s1 + $0x70] sm:$0xff]
    %v31 = vld [vmem:[%s1 + $0x78] sm:$0xff]
    %v32 = vld [vmem:[%s1 + $0x80] sm:$0xff]
    %v33 = vld [vmem:[%s1 + $0x88] sm:$0xff]
    %v34 = vld [vmem:[%s1 + $0x90] sm:$0xff]
    %v35 = vld [vmem:[%s1 + $0x98] sm:$0xff]
    %v36 = vld [vmem:[%s1 + $0xa0] sm:$0xff]
    %v37 = vld [vmem:[%s1 + $0xa8] sm:$0xff]
    %v38 = vld [vmem:[%s1 + $0xb0] sm:$0xff]
    %v39 = vld [vmem:[%s1 + $0xb8] sm:$0xff]
    %v40 = vld [vmem:[%s1 + $0xc0] sm:$0xff]
    %v41 = vld [vmem:[%s1 + $0xc8] sm:$0xff]
    %v42 = vld [vmem:[%s1 + $0xd0] sm:$0xff]
    %v43 = vld [vmem:[%s1 + $0xd8] sm:$0xff]
    %v44 = vld [vmem:[%s1 + $0xe0] sm:$0xff]
    %v45 = vld [vmem:[%s1 + $0xe8] sm:$0xff]
    %v46 = vld [vmem:[%s1 + $0xf0] sm:$0xff]
    %v47 = vld [vmem:[%s1 + $0xf8] sm:$0xff]
    %v48 = vld [vmem:[%s1 + $0x100] sm:$0xff]
    %v49 = vld [vmem:[%s1 + $0x108] sm:$0xff]
    %v50 = vld [vmem:[%s1 + $0x110] sm:$0xff]
    %v51 = vld [vmem:[%s1 + $0x118] sm:$0xff]
    %v52 = vld [vmem:[%s1 + $0x120] sm:$0xff]
    %v53 = vld [vmem:[%s1 + $0x128] sm:$0xff]
    %v54 = vld [vmem:[%s1 + $0x130] sm:$0xff]
    %v55 = vld [vmem:[%s1 + $0x138] sm:$0xff]
    %v56 = vld [vmem:[%s1 + $0x140] sm:$0xff]
    %v57 = vld [vmem:[%s1 + $0x148] sm:$0xff]
    %v58 = vld [vmem:[%s1 + $0x150] sm:$0xff]
    %v59 = vld [vmem:[%s1 + $0x158] sm:$0xff]
    %v60 = vld [vmem:[%s1 + $0x160] sm:$0xff]
    %v61 = vld [vmem:[%s1 + $0x168] sm:$0xff]
    %v62 = vld [vmem:[%s1 + $0x170] sm:$0xff]
    %v63 = vld [vmem:[%s1 + $0x178] sm:$0xff]
    %v64 = vld [vmem:[%s1 + $0x180] sm:$0xff]
    %v65 = vld [vmem:[%s1 + $0x188] sm:$0xff]
    %v66 = vld [vmem:[%s1 + $0x190] sm:$0xff]
    %v67 = vld [vmem:[%s1 + $0x198] sm:$0xff]
    %v68 = vld [vmem:[%s1 + $0x1a0] sm:$0xff]
    %v69 = vld [vmem:[%s1 + $0x1a8] sm:$0xff]
    %v70 = vld [vmem:[%s1 + $0x1b0] sm:$0xff]
    %v71 = vld [vmem:[%s1 + $0x1b8] sm:$0xff]
    %v72 = vld [vmem:[%s1 + $0x1c0] sm:$0xff]
    %v73 = vld [vmem:[%s1 + $0x1c8] sm:$0xff]
    %v74 = vld [vmem:[%s1 + $0x1d0] sm:$0xff]
    %v75 = vld [vmem:[%s1 + $0x1d8] sm:$0xff]
    %v76 = vld [vmem:[%s1 + $0x1e0] sm:$0xff]
    %v77 = vld [vmem:[%s1 + $0x1e8] sm:$0xff]
    %v78 = vld [vmem:[%s1 + $0x1f0] sm:$0xff]
    %v79 = vld [vmem:[%s1 + $0x1f8] sm:$0xff]
    %v80 = vld [vmem:[%s1 + $0x200] sm:$0xff]
    %v81 = vld [vmem:[%s1 + $0x208] sm:$0xff]
    %v82 = vld [vmem:[%s1 + $0x210] sm:$0xff]
    %v83 = vld [vmem:[%s1 + $0x218] sm:$0xff]
    %v84 = vld [vmem:[%s1 + $0x220] sm:$0xff]
    %v85 = vld [vmem:[%s1 + $0x228] sm:$0xff]
    %v86 = vld [vmem:[%s1 + $0x230] sm:$0xff]
    %v87 = vld [vmem:[%s1 + $0x238] sm:$0xff]
    %v88 = vld [vmem:[%s1 + $0x240] sm:$0xff]
    %v89 = vld [vmem:[%s1 + $0x248] sm:$0xff]
    %v90 = vld [vmem:[%s1 + $0x250] sm:$0xff]
    %v91 = vld [vmem:[%s1 + $0x258] sm:$0xff]
    %v92 = vld [vmem:[%s1 + $0x260] sm:$0xff]
    %v93 = vld [vmem:[%s1 + $0x268] sm:$0xff]
    %v94 = vld [vmem:[%s1 + $0x270] sm:$0xff]
    %v95 = vld [vmem:[%s1 + $0x278] sm:$0xff]
    %v96 = vld [vmem:[%s1 + $0x280] sm:$0xff]
    %v97 = vld [vmem:[%s1 + $0x288] sm:$0xff]
    %v98 = vld [vmem:[%s1 + $0x290] sm:$0xff]
    %v99 = vld [vmem:[%s1 + $0x298] sm:$0xff]
    %v100 = vld [vmem:[%s1 + $0x2a0] sm:$0xff]
    %v101 = vld [vmem:[%s1 + $0x2a8] sm:$0xff]
    %v102 = vld [vmem:[%s1 + $0x2b0] sm:$0xff]
    %v103 = vld [vmem:[%s1 + $0x2b8] sm:$0xff]
    %v104 = vld [vmem:[%s1 + $0x2c0] sm:$0xff]
    %v105 = vld [vmem:[%s1 + $0x2c8] sm:$0xff]
    %v106 = vld [vmem:[%s1 + $0x2d0] sm:$0xff]
    %v107 = vld [vmem:[%s1 + $0x2d8] sm:$0xff]
    %v108 = vld [vmem:[%s1 + $0x2e0] sm:$0xff]
    %v109 = vld [vmem:[%s1 + $0x2e8] sm:$0xff]
    %v110 = vld [vmem:[%s1 + $0x2f0] sm:$0xff]
    %v111 = vld [vmem:[%s1 + $0x2f8] sm:$0xff]
    %v112 = vld [vmem:[%s1 + $0x300] sm:$0xff]
    %v113 = vld [vmem:[%s1 + $0x308] sm:$0xff]
    %v114 = vld [vmem:[%s1 + $0x310] sm:$0xff]
    %v115 = vld [vmem:[%s1 + $0x318] sm:$0xff]
    %v116 = vld [vmem:[%s1 + $0x320] sm:$0xff]
    %v117 = vld [vmem:[%s1 + $0x328] sm:$0xff]
    %v118 = vld [vmem:[%s1 + $0x330] sm:$0xff]
    %v119 = vld [vmem:[%s1 + $0x338] sm:$0xff]
    %v120 = vld [vmem:[%s1 + $0x340] sm:$0xff]
    %v121 = vld [vmem:[%s1 + $0x348] sm:$0xff]
    %v122 = vld [vmem:[%s1 + $0x350] sm:$0xff]
    %v123 = vld [vmem:[%s1 + $0x358] sm:$0xff]
    %v124 = vld [vmem:[%s1 + $0x360] sm:$0xff]
    %v125 = vld [vmem:[%s1 + $0x368] sm:$0xff]
    %v126 = vld [vmem:[%s1 + $0x370] sm:$0xff]
    %v127 = vld [vmem:[%s1 + $0x378] sm:$0xff]
    %v128 = vld [vmem:[%s1 + $0x380] sm:$0xff]
    %v129 = vld [vmem:[%s1 + $0x388] sm:$0xff]
    %v130 = vld [vmem:[%s1 + $0x390] sm:$0xff]
    %v131 = vld [vmem:[%s1 + $0x398] sm:$0xff]
    %v132 = vld [vmem:[%s1 + $0x3a0] sm:$0xff]
    %v133 = vld [vmem:[%s1 + $0x3a8] sm:$0xff]
    %v134 = vld [vmem:[%s1 + $0x3b0] sm:$0xff]
    %v135 = vld [vmem:[%s1 + $0x3b8] sm:$0xff]
    %v136 = vld [vmem:[%s1 + $0x3c0] sm:$0xff]
    %v137 = vld [vmem:[%s1 + $0x3c8] sm:$0xff]
    %v138 = vld [vmem:[%s1 + $0x3d0] sm:$0xff]
    %v139 = vld [vmem:[%s1 + $0x3d8] sm:$0xff]
    %v140 = vld [vmem:[%s1 + $0x3e0] sm:$0xff]
    %v141 = vld [vmem:[%s1 + $0x3e8] sm:$0xff]
    %v142 = vld [vmem:[%s1 + $0x3f0] sm:$0xff]
    %v143 = vld [vmem:[%s1 + $0x3f8] sm:$0xff]
    %v144 = vld [vmem:[%s1 + $0x400] sm:$0xff]
    %v145 = vld [vmem:[%s1 + $0x408] sm:$0xff]
    %v146 = vld [vmem:[%s1 + $0x410] sm:$0xff]
    %v147 = vld [vmem:[%s1 + $0x418] sm:$0xff]
    %v148 = vld [vmem:[%s1 + $0x420] sm:$0xff]
    %v149 = vld [vmem:[%s1 + $0x428] sm:$0xff]
    %v150 = vld [vmem:[%s1 + $0x430] sm:$0xff]
    %v151 = vld [vmem:[%s1 + $0x438] sm:$0xff]
    %v152 = vld [vmem:[%s1 + $0x440] sm:$0xff]
    %v153 = vld [vmem:[%s1 + $0x448] sm:$0xff]
    %v154 = vld [vmem:[%s1 + $0x450] sm:$0xff]
    %v155 = vld [vmem:[%s1 + $0x458] sm:$0xff]
    %v156 = vld [vmem:[%s1 + $0x460] sm:$0xff]
    %v157 = vld [vmem:[%s1 + $0x468] sm:$0xff]
    %v158 = vld [vmem:[%s1 + $0x470] sm:$0xff]
    %v159 = vld [vmem:[%s1 + $0x478] sm:$0xff]
    %v160 = vld [vmem:[%s1 + $0x480] sm:$0xff]
    %v161 = vld [vmem:[%s1 + $0x488] sm:$0xff]
    %v162 = vld [vmem:[%s1 + $0x490] sm:$0xff]
    %v163 = vld [vmem:[%s1 + $0x498] sm:$0xff]
    %v164 = vld [vmem:[%s1 + $0x4a0] sm:$0xff]
    %v165 = vld [vmem:[%s1 + $0x4a8] sm:$0xff]
    %v166 = vld [vmem:[%s1 + $0x4b0] sm:$0xff]
    %v167 = vld [vmem:[%s1 + $0x4b8] sm:$0xff]
    %v168 = vld [vmem:[%s1 + $0x4c0] sm:$0xff]
    %v169 = vld [vmem:[%s1 + $0x4c8] sm:$0xff]
    %v170 = vld [vmem:[%s1 + $0x4d0] sm:$0xff]
    %v171 = vld [vmem:[%s1 + $0x4d8] sm:$0xff]
    %v172 = vld [vmem:[%s1 + $0x4e0] sm:$0xff]
    %v173 = vld [vmem:[%s1 + $0x4e8] sm:$0xff]
    %v174 = vld [vmem:[%s1 + $0x4f0] sm:$0xff]
    %v175 = vld [vmem:[%s1 + $0x4f8] sm:$0xff]
    %v176 = vld [vmem:[%s1 + $0x500] sm:$0xff]
    %v177 = vld [vmem:[%s1 + $0x508] sm:$0xff]
    %v178 = vld [vmem:[%s1 + $0x510] sm:$0xff]
    %v179 = vld [vmem:[%s1 + $0x518] sm:$0xff]
    %v180 = vld [vmem:[%s1 + $0x520] sm:$0xff]
    %v181 = vld [vmem:[%s1 + $0x528] sm:$0xff]
    %v182 = vld [vmem:[%s1 + $0x530] sm:$0xff]
    %v183 = vld [vmem:[%s1 + $0x538] sm:$0xff]
    %v184 = vld [vmem:[%s1 + $0x540] sm:$0xff]
    %v185 = vld [vmem:[%s1 + $0x548] sm:$0xff]
    %v186 = vld [vmem:[%s1 + $0x550] sm:$0xff]
    %v187 = vld [vmem:[%s1 + $0x558] sm:$0xff]
    %v188 = vld [vmem:[%s1 + $0x560] sm:$0xff]
    %v189 = vld [vmem:[%s1 + $0x568] sm:$0xff]
    %v190 = vld [vmem:[%s1 + $0x570] sm:$0xff]
    %v191 = vld [vmem:[%s1 + $0x578] sm:$0xff]
    %v192 = vld [vmem:[%s1 + $0x580] sm:$0xff]
    %v193 = vld [vmem:[%s1 + $0x588] sm:$0xff]
    %v194 = vld [vmem:[%s1 + $0x590] sm:$0xff]
    %v195 = vld [vmem:[%s1 + $0x598] sm:$0xff]
    %v196 = vld [vmem:[%s1 + $0x5a0] sm:$0xff]
    %v197 = vld [vmem:[%s1 + $0x5a8] sm:$0xff]
    %v198 = vld [vmem:[%s1 + $0x5b0] sm:$0xff]
    %v199 = vld [vmem:[%s1 + $0x5b8] sm:$0xff]
    %v200 = vld [vmem:[%s1 + $0x5c0] sm:$0xff]
    %v201 = vld [vmem:[%s1 + $0x5c8] sm:$0xff]
    %v202 = vld [vmem:[%s1 + $0x5d0] sm:$0xff]
    %v203 = vld [vmem:[%s1 + $0x5d8] sm:$0xff]
    %v204 = vld [vmem:[%s1 + $0x5e0] sm:$0xff]
    %v205 = vld [vmem:[%s1 + $0x5e8] sm:$0xff]
    %v206 = vld [vmem:[%s1 + $0x5f0] sm:$0xff]
    %v207 = vld [vmem:[%s1 + $0x5f8] sm:$0xff]
    %v208 = vld [vmem:[%s1 + $0x600] sm:$0xff]
    %v209 = vld [vmem:[%s1 + $0x608] sm:$0xff]
    %v210 = vld [vmem:[%s1 + $0x610] sm:$0xff]
    %v211 = vld [vmem:[%s1 + $0x618] sm:$0xff]
    %v212 = vld [vmem:[%s1 + $0x620] sm:$0xff]
    %v213 = vld [vmem:[%s1 + $0x628] sm:$0xff]
    %v214 = vld [vmem:[%s1 + $0x630] sm:$0xff]
    %v215 = vld [vmem:[%s1 + $0x638] sm:$0xff]
    %v216 = vld [vmem:[%s1 + $0x640] sm:$0xff]
    %v217 = vld [vmem:[%s1 + $0x648] sm:$0xff]
    %v218 = vld [vmem:[%s1 + $0x650] sm:$0xff]
    %v219 = vld [vmem:[%s1 + $0x658] sm:$0xff]
    %v220 = vld [vmem:[%s1 + $0x660] sm:$0xff]
    %v221 = vld [vmem:[%s1 + $0x668] sm:$0xff]
    %v222 = vld [vmem:[%s1 + $0x670] sm:$0xff]
    %v223 = vld [vmem:[%s1 + $0x678] sm:$0xff]
    %v224 = vld [vmem:[%s1 + $0x680] sm:$0xff]
    %v225 = vld [vmem:[%s1 + $0x688] sm:$0xff]
    %v226 = vld [vmem:[%s1 + $0x690] sm:$0xff]
    %v227 = vld [vmem:[%s1 + $0x698] sm:$0xff]
    %v228 = vld [vmem:[%s1 + $0x6a0] sm:$0xff]
    %v229 = vld [vmem:[%s1 + $0x6a8] sm:$0xff]
    %v230 = vld [vmem:[%s1 + $0x6b0] sm:$0xff]
    %v231 = vld [vmem:[%s1 + $0x6b8] sm:$0xff]
    %v232 = vld [vmem:[%s1 + $0x6c0] sm:$0xff]
    %v233 = vld [vmem:[%s1 + $0x6c8] sm:$0xff]
    %v234 = vld [vmem:[%s1 + $0x6d0] sm:$0xff]
    %v235 = vld [vmem:[%s1 + $0x6d8] sm:$0xff]
    %v236 = vld [vmem:[%s1 + $0x6e0] sm:$0xff]
    %v237 = vld [vmem:[%s1 + $0x6e8] sm:$0xff]
    %v238 = vld [vmem:[%s1 + $0x6f0] sm:$0xff]
    %v239 = vld [vmem:[%s1 + $0x6f8] sm:$0xff]
    %v240 = vld [vmem:[%s1 + $0x700] sm:$0xff]
    %v241 = vld [vmem:[%s1 + $0x708] sm:$0xff]
    %v242 = vld [vmem:[%s1 + $0x710] sm:$0xff]
    %v243 = vld [vmem:[%s1 + $0x718] sm:$0xff]
    %v244 = vld [vmem:[%s1 + $0x720] sm:$0xff]
    %v245 = vld [vmem:[%s1 + $0x728] sm:$0xff]
    %v246 = vld [vmem:[%s1 + $0x730] sm:$0xff]
    %v247 = vld [vmem:[%s1 + $0x738] sm:$0xff]
    %v248 = vld [vmem:[%s1 + $0x740] sm:$0xff]
    %v249 = vld [vmem:[%s1 + $0x748] sm:$0xff]
    %v250 = vld [vmem:[%s1 + $0x750] sm:$0xff]
    %v251 = vld [vmem:[%s1 + $0x758] sm:$0xff]
    %v252 = vld [vmem:[%s1 + $0x760] sm:$0xff]
    %v253 = vld [vmem:[%s1 + $0x768] sm:$0xff]
    %v254 = vld [vmem:[%s1 + $0x770] sm:$0xff]
    %v255 = vld [vmem:[%s1 + $0x778] sm:$0xff]
    %v256 = vld [vmem:[%s2] sm:$0x7]
    %v258 = vlaneseq
    %v259 = vshrl.u32 %v258, 7
    %v260 = vsub.s32 0, %v259
    %v261 = vrot.slane %v15, %v260
    %v262 = vlaneseq
    %v263 = vshrl.u32 %v262, 7
    %v264 = vsub.s32 1, %v263
    %v265 = vrot.slane %v15, %v264
    %v266 = vlaneseq
    %v267 = vshrl.u32 %v266, 7
    %v268 = vsub.s32 2, %v267
    %v269 = vrot.slane %v15, %v268
    %v270 = vlaneseq
    %v271 = vshrl.u32 %v270, 7
    %v272 = vsub.s32 3, %v271
    %v273 = vrot.slane %v15, %v272
    %v274 = vlaneseq
    %v275 = vshrl.u32 %v274, 7
    %v276 = vsub.s32 4, %v275
    %v277 = vrot.slane %v15, %v276
    %v284 = vlaneseq
    %v285 = vshrl.u32 %v284, 7
    %v286 = vsub.s32 0, %v285
    %v287 = vrot.slane %v256, %v286
    %v288 = vlaneseq
    %v289 = vshrl.u32 %v288, 7
    %v290 = vsub.s32 1, %v289
    %v291 = vrot.slane %v256, %v290
    %v292 = vlaneseq
    %v293 = vshrl.u32 %v292, 7
    %v294 = vsub.s32 2, %v293
    %v295 = vrot.slane %v256, %v294
    %299 = vmatprep.subr.mxu0 %v62
    %300 = vmatpush1.msra.mxu0 %v61
    %301 = vmatprep.subr.mxu0 %v59
    %302 = vmatpush1.msra.mxu0 %v58
    %303 = vmatprep.subr.mxu0 %v56
    %304 = vmatpush1.msra.mxu0 %v55
    %305 = vmatprep.subr.mxu0 %v53
    %306 = vmatpush1.msra.mxu0 %v52
    %307 = vmatprep.subr.mxu0 %v50
    %308 = vmatpush1.msra.mxu0 %v49
    %309 = vmatprep.subr.mxu0 %v47
    %310 = vmatpush1.msra.mxu0 %v46
    %311 = vmatprep.subr.mxu0 %v44
    %312 = vmatpush1.msra.mxu0 %v43
    %313 = vmatprep.subr.mxu0 %v41
    %314 = vmatpush1.msra.mxu0 %v40
    %315 = vmatprep.subr.mxu0 %v38
    %316 = vmatpush1.msra.mxu0 %v37
    %317 = vmatprep.subr.mxu0 %v35
    %318 = vmatpush1.msra.mxu0 %v34
    %319 = vmatprep.subr.mxu0 %v32
    %320 = vmatpush1.msra.mxu0 %v31
    %321 = vmatprep.subr.mxu0 %v29
    %322 = vmatpush1.msra.mxu0 %v28
    %323 = vmatprep.subr.mxu0 %v26
    %324 = vmatpush1.msra.mxu0 %v25
    %325 = vmatprep.subr.mxu0 %v23
    %326 = vmatpush1.msra.mxu0 %v22
    %327 = vmatprep.subr.mxu0 %v20
    %328 = vmatpush1.msra.mxu0 %v19
    %329 = vmatprep.subr.mxu0 %v17
    %330 = vmatpush1.msra.mxu0 %v16
    %331 = vmatprep.subr.mxu0 %v110
    %332 = vmatpush2.msra.mxu0 %v109
    %333 = vmatprep.subr.mxu0 %v107
    %334 = vmatpush2.msra.mxu0 %v106
    %335 = vmatprep.subr.mxu0 %v104
    %336 = vmatpush2.msra.mxu0 %v103
    %337 = vmatprep.subr.mxu0 %v101
    %338 = vmatpush2.msra.mxu0 %v100
    %339 = vmatprep.subr.mxu0 %v98
    %340 = vmatpush2.msra.mxu0 %v97
    %341 = vmatprep.subr.mxu0 %v95
    %342 = vmatpush2.msra.mxu0 %v94
    %343 = vmatprep.subr.mxu0 %v92
    %344 = vmatpush2.msra.mxu0 %v91
    %345 = vmatprep.subr.mxu0 %v89
    %346 = vmatpush2.msra.mxu0 %v88
    %347 = vmatprep.subr.mxu0 %v86
    %348 = vmatpush2.msra.mxu0 %v85
    %349 = vmatprep.subr.mxu0 %v83
    %350 = vmatpush2.msra.mxu0 %v82
    %351 = vmatprep.subr.mxu0 %v80
    %352 = vmatpush2.msra.mxu0 %v79
    %353 = vmatprep.subr.mxu0 %v77
    %354 = vmatpush2.msra.mxu0 %v76
    %355 = vmatprep.subr.mxu0 %v74
    %356 = vmatpush2.msra.mxu0 %v73
    %357 = vmatprep.subr.mxu0 %v71
    %358 = vmatpush2.msra.mxu0 %v70
    %359 = vmatprep.subr.mxu0 %v68
    %360 = vmatpush2.msra.mxu0 %v67
    %361 = vmatprep.subr.mxu0 %v65
    %362 = vmatpush2.msra.mxu0 %v64
    %363 = vmatprep.mubr.f32.mxu0 %v265
    %364 = vmatmul.mubr.f32.gmra.mxu0 %v261
    %v365 = vpop.f32.mrf.mxu0
    %v366 = vadd.f32 %v287, %v365
    %v367 = vpop.f32.mrf.mxu0
    %v368 = vadd.f32 %v291, %v367
    %369 = vdwg.mxu0
    %370 = vmatprep.subr.mxu0 %v158
    %371 = vmatpush1.msra.mxu0 %v157
    %372 = vmatprep.subr.mxu0 %v155
    %373 = vmatpush1.msra.mxu0 %v154
    %374 = vmatprep.subr.mxu0 %v152
    %375 = vmatpush1.msra.mxu0 %v151
    %376 = vmatprep.subr.mxu0 %v149
    %377 = vmatpush1.msra.mxu0 %v148
    %378 = vmatprep.subr.mxu0 %v146
    %379 = vmatpush1.msra.mxu0 %v145
    %380 = vmatprep.subr.mxu0 %v143
    %381 = vmatpush1.msra.mxu0 %v142
    %382 = vmatprep.subr.mxu0 %v140
    %383 = vmatpush1.msra.mxu0 %v139
    %384 = vmatprep.subr.mxu0 %v137
    %385 = vmatpush1.msra.mxu0 %v136
    %386 = vmatprep.subr.mxu0 %v134
    %387 = vmatpush1.msra.mxu0 %v133
    %388 = vmatprep.subr.mxu0 %v131
    %389 = vmatpush1.msra.mxu0 %v130
    %390 = vmatprep.subr.mxu0 %v128
    %391 = vmatpush1.msra.mxu0 %v127
    %392 = vmatprep.subr.mxu0 %v125
    %393 = vmatpush1.msra.mxu0 %v124
    %394 = vmatprep.subr.mxu0 %v122
    %395 = vmatpush1.msra.mxu0 %v121
    %396 = vmatprep.subr.mxu0 %v119
    %397 = vmatpush1.msra.mxu0 %v118
    %398 = vmatprep.subr.mxu0 %v116
    %399 = vmatpush1.msra.mxu0 %v115
    %400 = vmatprep.subr.mxu0 %v113
    %401 = vmatpush1.msra.mxu0 %v112
    %402 = vmatprep.subr.mxu0 %v206
    %403 = vmatpush2.msra.mxu0 %v205
    %404 = vmatprep.subr.mxu0 %v203
    %405 = vmatpush2.msra.mxu0 %v202
    %406 = vmatprep.subr.mxu0 %v200
    %407 = vmatpush2.msra.mxu0 %v199
    %408 = vmatprep.subr.mxu0 %v197
    %409 = vmatpush2.msra.mxu0 %v196
    %410 = vmatprep.subr.mxu0 %v194
    %411 = vmatpush2.msra.mxu0 %v193
    %412 = vmatprep.subr.mxu0 %v191
    %413 = vmatpush2.msra.mxu0 %v190
    %414 = vmatprep.subr.mxu0 %v188
    %415 = vmatpush2.msra.mxu0 %v187
    %416 = vmatprep.subr.mxu0 %v185
    %417 = vmatpush2.msra.mxu0 %v184
    %418 = vmatprep.subr.mxu0 %v182
    %419 = vmatpush2.msra.mxu0 %v181
    %420 = vmatprep.subr.mxu0 %v179
    %421 = vmatpush2.msra.mxu0 %v178
    %422 = vmatprep.subr.mxu0 %v176
    %423 = vmatpush2.msra.mxu0 %v175
    %424 = vmatprep.subr.mxu0 %v173
    %425 = vmatpush2.msra.mxu0 %v172
    %426 = vmatprep.subr.mxu0 %v170
    %427 = vmatpush2.msra.mxu0 %v169
    %428 = vmatprep.subr.mxu0 %v167
    %429 = vmatpush2.msra.mxu0 %v166
    %430 = vmatprep.subr.mxu0 %v164
    %431 = vmatpush2.msra.mxu0 %v163
    %432 = vmatprep.subr.mxu0 %v161
    %433 = vmatpush2.msra.mxu0 %v160
    %434 = vmatprep.mubr.f32.mxu0 %v273
    %435 = vmatmul.mubr.f32.gmra.mxu0 %v269
    %v436 = vpop.f32.mrf.mxu0
    %v437 = vadd.f32 %v366, %v436
    %v438 = vpop.f32.mrf.mxu0
    %v439 = vadd.f32 %v368, %v438
    %440 = vdwg.mxu0
    %441 = vmatprep.subr.mxu0 %v254
    %442 = vmatpush1.msra.mxu0 %v253
    %443 = vmatprep.subr.mxu0 %v251
    %444 = vmatpush1.msra.mxu0 %v250
    %445 = vmatprep.subr.mxu0 %v248
    %446 = vmatpush1.msra.mxu0 %v247
    %447 = vmatprep.subr.mxu0 %v245
    %448 = vmatpush1.msra.mxu0 %v244
    %449 = vmatprep.subr.mxu0 %v242
    %450 = vmatpush1.msra.mxu0 %v241
    %451 = vmatprep.subr.mxu0 %v239
    %452 = vmatpush1.msra.mxu0 %v238
    %453 = vmatprep.subr.mxu0 %v236
    %454 = vmatpush1.msra.mxu0 %v235
    %455 = vmatprep.subr.mxu0 %v233
    %456 = vmatpush1.msra.mxu0 %v232
    %457 = vmatprep.subr.mxu0 %v230
    %458 = vmatpush1.msra.mxu0 %v229
    %459 = vmatprep.subr.mxu0 %v227
    %460 = vmatpush1.msra.mxu0 %v226
    %461 = vmatprep.subr.mxu0 %v224
    %462 = vmatpush1.msra.mxu0 %v223
    %463 = vmatprep.subr.mxu0 %v221
    %464 = vmatpush1.msra.mxu0 %v220
    %465 = vmatprep.subr.mxu0 %v218
    %466 = vmatpush1.msra.mxu0 %v217
    %467 = vmatprep.subr.mxu0 %v215
    %468 = vmatpush1.msra.mxu0 %v214
    %469 = vmatprep.subr.mxu0 %v212
    %470 = vmatpush1.msra.mxu0 %v211
    %471 = vmatprep.subr.mxu0 %v209
    %472 = vmatpush1.msra.mxu0 %v208
    %473 = vmatprep.subr.mxu0 0.0
    %474 = vmatpush2.msra.mxu0 0.0
    %475 = vmatprep.subr.mxu0 0.0
    %476 = vmatpush2.msra.mxu0 0.0
    %477 = vmatprep.subr.mxu0 0.0
    %478 = vmatpush2.msra.mxu0 0.0
    %479 = vmatprep.subr.mxu0 0.0
    %480 = vmatpush2.msra.mxu0 0.0
    %481 = vmatprep.subr.mxu0 0.0
    %482 = vmatpush2.msra.mxu0 0.0
    %483 = vmatprep.subr.mxu0 0.0
    %484 = vmatpush2.msra.mxu0 0.0
    %485 = vmatprep.subr.mxu0 0.0
    %486 = vmatpush2.msra.mxu0 0.0
    %487 = vmatprep.subr.mxu0 0.0
    %488 = vmatpush2.msra.mxu0 0.0
    %489 = vmatprep.subr.mxu0 0.0
    %490 = vmatpush2.msra.mxu0 0.0
    %491 = vmatprep.subr.mxu0 0.0
    %492 = vmatpush2.msra.mxu0 0.0
    %493 = vmatprep.subr.mxu0 0.0
    %494 = vmatpush2.msra.mxu0 0.0
    %495 = vmatprep.subr.mxu0 0.0
    %496 = vmatpush2.msra.mxu0 0.0
    %497 = vmatprep.subr.mxu0 0.0
    %498 = vmatpush2.msra.mxu0 0.0
    %499 = vmatprep.subr.mxu0 0.0
    %500 = vmatpush2.msra.mxu0 0.0
    %501 = vmatprep.subr.mxu0 0.0
    %502 = vmatpush2.msra.mxu0 0.0
    %503 = vmatprep.subr.mxu0 0.0
    %504 = vmatpush2.msra.mxu0 0.0
    %505 = vmatprep.mubr.f32.mxu0 0.0
    %506 = vmatmul.mubr.f32.gmra.mxu0 %v277
    %v507 = vpop.f32.mrf.mxu0
    %v508 = vadd.f32 %v437, %v507
    %v509 = vpop.f32.mrf.mxu0
    %v510 = vadd.f32 %v439, %v509
    %511 = vdwg.mxu0
    %512 = vmatprep.subr.mxu0 0.0
    %513 = vmatpush1.msra.mxu0 %v63
    %514 = vmatprep.subr.mxu0 0.0
    %515 = vmatpush1.msra.mxu0 %v60
    %516 = vmatprep.subr.mxu0 0.0
    %517 = vmatpush1.msra.mxu0 %v57
    %518 = vmatprep.subr.mxu0 0.0
    %519 = vmatpush1.msra.mxu0 %v54
    %520 = vmatprep.subr.mxu0 0.0
    %521 = vmatpush1.msra.mxu0 %v51
    %522 = vmatprep.subr.mxu0 0.0
    %523 = vmatpush1.msra.mxu0 %v48
    %524 = vmatprep.subr.mxu0 0.0
    %525 = vmatpush1.msra.mxu0 %v45
    %526 = vmatprep.subr.mxu0 0.0
    %527 = vmatpush1.msra.mxu0 %v42
    %528 = vmatprep.subr.mxu0 0.0
    %529 = vmatpush1.msra.mxu0 %v39
    %530 = vmatprep.subr.mxu0 0.0
    %531 = vmatpush1.msra.mxu0 %v36
    %532 = vmatprep.subr.mxu0 0.0
    %533 = vmatpush1.msra.mxu0 %v33
    %534 = vmatprep.subr.mxu0 0.0
    %535 = vmatpush1.msra.mxu0 %v30
    %536 = vmatprep.subr.mxu0 0.0
    %537 = vmatpush1.msra.mxu0 %v27
    %538 = vmatprep.subr.mxu0 0.0
    %539 = vmatpush1.msra.mxu0 %v24
    %540 = vmatprep.subr.mxu0 0.0
    %541 = vmatpush1.msra.mxu0 %v21
    %542 = vmatprep.subr.mxu0 0.0
    %543 = vmatpush1.msra.mxu0 %v18
    %544 = vmatprep.subr.mxu0 0.0
    %545 = vmatpush2.msra.mxu0 %v111
    %546 = vmatprep.subr.mxu0 0.0
    %547 = vmatpush2.msra.mxu0 %v108
    %548 = vmatprep.subr.mxu0 0.0
    %549 = vmatpush2.msra.mxu0 %v105
    %550 = vmatprep.subr.mxu0 0.0
    %551 = vmatpush2.msra.mxu0 %v102
    %552 = vmatprep.subr.mxu0 0.0
    %553 = vmatpush2.msra.mxu0 %v99
    %554 = vmatprep.subr.mxu0 0.0
    %555 = vmatpush2.msra.mxu0 %v96
    %556 = vmatprep.subr.mxu0 0.0
    %557 = vmatpush2.msra.mxu0 %v93
    %558 = vmatprep.subr.mxu0 0.0
    %559 = vmatpush2.msra.mxu0 %v90
    %560 = vmatprep.subr.mxu0 0.0
    %561 = vmatpush2.msra.mxu0 %v87
    %562 = vmatprep.subr.mxu0 0.0
    %563 = vmatpush2.msra.mxu0 %v84
    %564 = vmatprep.subr.mxu0 0.0
    %565 = vmatpush2.msra.mxu0 %v81
    %566 = vmatprep.subr.mxu0 0.0
    %567 = vmatpush2.msra.mxu0 %v78
    %568 = vmatprep.subr.mxu0 0.0
    %569 = vmatpush2.msra.mxu0 %v75
    %570 = vmatprep.subr.mxu0 0.0
    %571 = vmatpush2.msra.mxu0 %v72
    %572 = vmatprep.subr.mxu0 0.0
    %573 = vmatpush2.msra.mxu0 %v69
    %574 = vmatprep.subr.mxu0 0.0
    %575 = vmatpush2.msra.mxu0 %v66
    %576 = vmatprep.mubr.f32.mxu0 %v265
    %577 = vmatmul.mubr.f32.gmra.mxu0 %v261
    %v578 = vpop.f32.mrf.mxu0
    %v579 = vadd.f32 %v295, %v578
    %v580 = vpop.f32.mrf.mxu0
    %581 = vdwg.mxu0
    %582 = vmatprep.subr.mxu0 0.0
    %583 = vmatpush1.msra.mxu0 %v159
    %584 = vmatprep.subr.mxu0 0.0
    %585 = vmatpush1.msra.mxu0 %v156
    %586 = vmatprep.subr.mxu0 0.0
    %587 = vmatpush1.msra.mxu0 %v153
    %588 = vmatprep.subr.mxu0 0.0
    %589 = vmatpush1.msra.mxu0 %v150
    %590 = vmatprep.subr.mxu0 0.0
    %591 = vmatpush1.msra.mxu0 %v147
    %592 = vmatprep.subr.mxu0 0.0
    %593 = vmatpush1.msra.mxu0 %v144
    %594 = vmatprep.subr.mxu0 0.0
    %595 = vmatpush1.msra.mxu0 %v141
    %596 = vmatprep.subr.mxu0 0.0
    %597 = vmatpush1.msra.mxu0 %v138
    %598 = vmatprep.subr.mxu0 0.0
    %599 = vmatpush1.msra.mxu0 %v135
    %600 = vmatprep.subr.mxu0 0.0
    %601 = vmatpush1.msra.mxu0 %v132
    %602 = vmatprep.subr.mxu0 0.0
    %603 = vmatpush1.msra.mxu0 %v129
    %604 = vmatprep.subr.mxu0 0.0
    %605 = vmatpush1.msra.mxu0 %v126
    %606 = vmatprep.subr.mxu0 0.0
    %607 = vmatpush1.msra.mxu0 %v123
    %608 = vmatprep.subr.mxu0 0.0
    %609 = vmatpush1.msra.mxu0 %v120
    %610 = vmatprep.subr.mxu0 0.0
    %611 = vmatpush1.msra.mxu0 %v117
    %612 = vmatprep.subr.mxu0 0.0
    %613 = vmatpush1.msra.mxu0 %v114
    %614 = vmatprep.subr.mxu0 0.0
    %615 = vmatpush2.msra.mxu0 %v207
    %616 = vmatprep.subr.mxu0 0.0
    %617 = vmatpush2.msra.mxu0 %v204
    %618 = vmatprep.subr.mxu0 0.0
    %619 = vmatpush2.msra.mxu0 %v201
    %620 = vmatprep.subr.mxu0 0.0
    %621 = vmatpush2.msra.mxu0 %v198
    %622 = vmatprep.subr.mxu0 0.0
    %623 = vmatpush2.msra.mxu0 %v195
    %624 = vmatprep.subr.mxu0 0.0
    %625 = vmatpush2.msra.mxu0 %v192
    %626 = vmatprep.subr.mxu0 0.0
    %627 = vmatpush2.msra.mxu0 %v189
    %628 = vmatprep.subr.mxu0 0.0
    %629 = vmatpush2.msra.mxu0 %v186
    %630 = vmatprep.subr.mxu0 0.0
    %631 = vmatpush2.msra.mxu0 %v183
    %632 = vmatprep.subr.mxu0 0.0
    %633 = vmatpush2.msra.mxu0 %v180
    %634 = vmatprep.subr.mxu0 0.0
    %635 = vmatpush2.msra.mxu0 %v177
    %636 = vmatprep.subr.mxu0 0.0
    %637 = vmatpush2.msra.mxu0 %v174
    %638 = vmatprep.subr.mxu0 0.0
    %639 = vmatpush2.msra.mxu0 %v171
    %640 = vmatprep.subr.mxu0 0.0
    %641 = vmatpush2.msra.mxu0 %v168
    %642 = vmatprep.subr.mxu0 0.0
    %643 = vmatpush2.msra.mxu0 %v165
    %644 = vmatprep.subr.mxu0 0.0
    %645 = vmatpush2.msra.mxu0 %v162
    %646 = vmatprep.mubr.f32.mxu0 %v273
    %647 = vmatmul.mubr.f32.gmra.mxu0 %v269
    %v648 = vpop.f32.mrf.mxu0
    %v649 = vadd.f32 %v579, %v648
    %v650 = vpop.f32.mrf.mxu0
    %651 = vdwg.mxu0
    %652 = vmatprep.subr.mxu0 0.0
    %653 = vmatpush1.msra.mxu0 %v255
    %654 = vmatprep.subr.mxu0 0.0
    %655 = vmatpush1.msra.mxu0 %v252
    %656 = vmatprep.subr.mxu0 0.0
    %657 = vmatpush1.msra.mxu0 %v249
    %658 = vmatprep.subr.mxu0 0.0
    %659 = vmatpush1.msra.mxu0 %v246
    %660 = vmatprep.subr.mxu0 0.0
    %661 = vmatpush1.msra.mxu0 %v243
    %662 = vmatprep.subr.mxu0 0.0
    %663 = vmatpush1.msra.mxu0 %v240
    %664 = vmatprep.subr.mxu0 0.0
    %665 = vmatpush1.msra.mxu0 %v237
    %666 = vmatprep.subr.mxu0 0.0
    %667 = vmatpush1.msra.mxu0 %v234
    %668 = vmatprep.subr.mxu0 0.0
    %669 = vmatpush1.msra.mxu0 %v231
    %670 = vmatprep.subr.mxu0 0.0
    %671 = vmatpush1.msra.mxu0 %v228
    %672 = vmatprep.subr.mxu0 0.0
    %673 = vmatpush1.msra.mxu0 %v225
    %674 = vmatprep.subr.mxu0 0.0
    %675 = vmatpush1.msra.mxu0 %v222
    %676 = vmatprep.subr.mxu0 0.0
    %677 = vmatpush1.msra.mxu0 %v219
    %678 = vmatprep.subr.mxu0 0.0
    %679 = vmatpush1.msra.mxu0 %v216
    %680 = vmatprep.subr.mxu0 0.0
    %681 = vmatpush1.msra.mxu0 %v213
    %682 = vmatprep.subr.mxu0 0.0
    %683 = vmatpush1.msra.mxu0 %v210
    %684 = vmatprep.subr.mxu0 0.0
    %685 = vmatpush2.msra.mxu0 0.0
    %686 = vmatprep.subr.mxu0 0.0
    %687 = vmatpush2.msra.mxu0 0.0
    %688 = vmatprep.subr.mxu0 0.0
    %689 = vmatpush2.msra.mxu0 0.0
    %690 = vmatprep.subr.mxu0 0.0
    %691 = vmatpush2.msra.mxu0 0.0
    %692 = vmatprep.subr.mxu0 0.0
    %693 = vmatpush2.msra.mxu0 0.0
    %694 = vmatprep.subr.mxu0 0.0
    %695 = vmatpush2.msra.mxu0 0.0
    %696 = vmatprep.subr.mxu0 0.0
    %697 = vmatpush2.msra.mxu0 0.0
    %698 = vmatprep.subr.mxu0 0.0
    %699 = vmatpush2.msra.mxu0 0.0
    %700 = vmatprep.subr.mxu0 0.0
    %701 = vmatpush2.msra.mxu0 0.0
    %702 = vmatprep.subr.mxu0 0.0
    %703 = vmatpush2.msra.mxu0 0.0
    %704 = vmatprep.subr.mxu0 0.0
    %705 = vmatpush2.msra.mxu0 0.0
    %706 = vmatprep.subr.mxu0 0.0
    %707 = vmatpush2.msra.mxu0 0.0
    %708 = vmatprep.subr.mxu0 0.0
    %709 = vmatpush2.msra.mxu0 0.0
    %710 = vmatprep.subr.mxu0 0.0
    %711 = vmatpush2.msra.mxu0 0.0
    %712 = vmatprep.subr.mxu0 0.0
    %713 = vmatpush2.msra.mxu0 0.0
    %714 = vmatprep.subr.mxu0 0.0
    %715 = vmatpush2.msra.mxu0 0.0
    %716 = vmatprep.mubr.f32.mxu0 0.0
    %717 = vmatmul.mubr.f32.gmra.mxu0 %v277
    %v718 = vpop.f32.mrf.mxu0
    %v719 = vadd.f32 %v649, %v718
    %v720 = vpop.f32.mrf.mxu0
    %721 = vdwg.mxu0
    %v725 = vcombine.low %v508, %v510
    %v727 = vunpack.c.l.s4 1966171168
    %v728 = vunpack.c.0.s8 %v727
    %v729 = vlaneseq
    %v730 = vshrl.u32 %v729, 7
    %v731 = vsub.s32 %v728, %v730
    %v732 = vrot.slane %v725, %v731
    %v734 = vunpack.c.l.s4 1966171168
    %v735 = vunpack.c.0.s8 %v734
    %v736 = vlaneseq
    %v737 = vshrl.u32 %v736, 7
    %v738 = vsub.s32 %v735, %v737
    %v739 = vrot.slane %v719, %v738
    %v740 = vcombine.low %v732, %v739
    %v742 = vunpack.c.l.s4 1966171168
    %v743 = vunpack.c.0.s8 %v742
    %v744 = vlaneseq
    %v745 = vshrl.u32 %v744, 7
    %v746 = vsub.s32 %v743, %v745
    %v747 = vrot.slane %v740, %v746
    %v749 = vlaneseq
    %vm750 = vcmp.ge.s32.totalorder %v749, 0
    %vm751 = vcmp.lt.s32.totalorder %v749, 320
    %vm752 = vmand %vm750, %vm751
    %753 = vst.msk [vmem:[#allocation2] sm:$0x7] %vm752, %v747
    // Predicated region
    $region14: #{tpu_custom_call.1} parent=1 // pred_check
      _
    $region15: #{tpu_custom_call.1} parent=1 // pred_check_branch
      %755 = sbr.rel (0) target = $region17
    $region16: #{tpu_custom_call.1} parent=1 // pred_region
      %s757 = ssub.s32 48, 48
      %758 = vsyncadd [#allocation3], %s757
      %s760 = sshll.u32 [#allocation2], 4
      %s761 = int_to_ptr.vmem [resolvable:$true] %s760
      %763 = dma.vmem_to_hbm [thread:$0]  %s761, 48, %s3, [#allocation3]
    $region17: #{tpu_custom_call.1} parent=1 // pred_fallthru
      _
    // Predicated region
    $region18: #{tpu_custom_call.1} parent=1 // pred_check
      _
    $region19: #{tpu_custom_call.1} parent=1 // pred_check_branch
      %765 = sbr.rel (0) target = $region21
    $region20: #{tpu_custom_call.1} parent=1 // pred_region
      %766 = dma.done [#allocation3], 48
    $region21: #{tpu_custom_call.1} parent=1 // pred_fallthru
      _
    %767 = vsyncpa [#allocation3], 1

</llo_original>
